<compile_context>
chip_gen: v7x
topology: tpu7x:2x2x1
jax: 0.10.0
libtpu: 0.0.40
codegen_flags: <defaults>
</compile_context>

<pallas_src>
import functools

import jax
import jax.numpy as jnp
from jax.experimental import pallas as pl
from jax.experimental.pallas import tpu as pltpu


def _ensemble_kernel(x_ref, w_ref, b_ref, o_ref):
    """grid = (num_K_tiles, num_D_tiles); D (axis 1) is the reduction axis.

    x_ref: (B, td)      bf16
    w_ref: (M, td, tk)  bf16   (M == 1 when the model-mean is folded in glue)
    b_ref: (1, tk)      f32    (already the mean bias over models)
    o_ref: (B, tk)      f32    (doubles as the reduction accumulator)
    """
    d = pl.program_id(1)
    num_d = pl.num_programs(1)
    num_models = w_ref.shape[0]  # static

    @pl.when(d == 0)
    def _init():
        o_ref[...] = jnp.zeros_like(o_ref)

    # All M per-model partial matmuls for this (D-tile, K-tile) in one grid
    # step: bf16 MXU matmuls, f32 accumulation in vregs, single VMEM update.
    acc = jnp.zeros(o_ref.shape, jnp.float32)
    for m in range(num_models):  # static, tiny unroll
        acc += jnp.dot(x_ref[...], w_ref[m],
                       preferred_element_type=jnp.float32)
    o_ref[...] += acc

    @pl.when(d == num_d - 1)
    def _finalize():
        # mode == 'mean': divide by M (no-op when the mean is pre-folded,
        # num_models == 1) and add the mean bias once.
        inv = 1.0 / num_models
        o_ref[...] = o_ref[...] * inv + b_ref[...]


def _pick_tile(dim, cap, align):
    """Largest tile <= cap dividing `dim` (multiple of `align` if possible)."""
    if dim <= cap:
        return dim
    t = (cap // align) * align
    while t >= align:
        if dim % t == 0:
            return t
        t -= align
    return dim  # fall back to the full dim (still a legal block)


def prepare_ensemble_params(weights, biases, *, fold_mean=True):
    """One-time parameter prep (reused across attack iterations).

    weights: [M, D, K] f32, biases: [M, 1, K] f32.
    Returns (w_bf16 [M' , D, K], b_mean_f32 [1, K]) with M' == 1 when
    fold_mean, exploiting mean_m(x@W[m]+b[m]) == x@mean(W) + mean(b).
    """
    b_mean = jnp.mean(biases.astype(jnp.float32), axis=0).reshape(1, -1)
    if fold_mean:
        w = jnp.mean(weights.astype(jnp.float32), axis=0, keepdims=True)
    else:
        w = weights
    return w.astype(jnp.bfloat16), b_mean


@jax.jit
def ensemble_forward(x_nchw, w_bf16, b_mean):
    """EnsembleModel.forward (mode='mean').

    x_nchw: [B, C, H, W] f32;  w_bf16: [M, D, K] bf16;  b_mean: [1, K] f32.
    Returns [B, K] f32 = mean over the M model logits.
    """
    B = x_nchw.shape[0]
    M, D, K = w_bf16.shape

    # Glue: flatten NCHW -> [B, D] (torch.flatten order) and stream as bf16.
    x_flat = x_nchw.reshape(B, D).astype(jnp.bfloat16)

    # Tile caps keep each double-buffered weight tile at a few MiB (bf16),
    # safe for v7x's 32 MiB scoped VMEM; for the demo shapes the grid is (1,1).
    td = _pick_tile(D, 2048, 128)
    tk = _pick_tile(K, 512, 128)
    grid = (K // tk, D // td)

    grid_spec = pltpu.PrefetchScalarGridSpec(
        num_scalar_prefetch=0,
        grid=grid,
        in_specs=[
            pl.BlockSpec((B, td), lambda k, d: (0, d)),       # x tile
            pl.BlockSpec((M, td, tk), lambda k, d: (0, d, k)),  # all M weights
            pl.BlockSpec((1, tk), lambda k, d: (0, k)),        # mean bias
        ],
        out_specs=pl.BlockSpec((B, tk), lambda k, d: (0, k)),  # f32 accumulator
    )

    return pl.pallas_call(
        _ensemble_kernel,
        out_shape=jax.ShapeDtypeStruct((B, K), jnp.float32),
        grid_spec=grid_spec,
        compiler_params=pltpu.CompilerParams(
            # K tiles parallel (uses both TCs on v7x when K >= 256),
            # D is the sequential reduction axis.
            dimension_semantics=("parallel", "arbitrary"),
        ),
    )(x_flat, w_bf16, b_mean)


def ensemble_forward_ref(x_nchw, weights, biases):
    """Pure-JAX f32 reference matching the PyTorch semantics (mode='mean')."""
    B = x_nchw.shape[0]
    x_flat = x_nchw.reshape(B, -1)
    per_model = jnp.einsum("bd,mdk->mbk", x_flat, weights) + biases  # [M, B, K]
    return jnp.mean(per_model, axis=0)


def _quantized_ref(x_nchw, w_bf16, b_mean):
    """Same math as the kernel (bf16 inputs, f32 accumulate) in plain JAX."""
    B = x_nchw.shape[0]
    xf = x_nchw.reshape(B, -1).astype(jnp.bfloat16).astype(jnp.float32)
    wf = w_bf16.astype(jnp.float32)
    return jnp.einsum("bd,mdk->bk", xf, wf) / w_bf16.shape[0] + b_mean


if __name__ == "__main__":
    # Small shapes consistent with an NCHW image-classifier ensemble.
    B, C, H, W = 2, 4, 16, 16
    D = C * H * W          # 1024
    K = 128                # num_classes (lane-aligned)
    M = 3                  # number of ensemble members

    key = jax.random.PRNGKey(0)
    kx, kw, kb = jax.random.split(key, 3)
    x = jax.random.normal(kx, (B, C, H, W), dtype=jnp.float32)
    weights = jax.random.normal(kw, (M, D, K), dtype=jnp.float32) * 0.02
    biases = jax.random.normal(kb, (M, 1, K), dtype=jnp.float32) * 0.1

    # f32 "module semantics" reference.
    ref = ensemble_forward_ref(x, weights, biases)

    # Path 1 (default, fastest): model-mean folded into the weights once.
    w_fold, b_mean = prepare_ensemble_params(weights, biases, fold_mean=True)
    out_fold = jax.block_until_ready(ensemble_forward(x, w_fold, b_mean))

    # Path 2: all M weight stacks streamed, mean over models inside the kernel.
    w_all, b_mean2 = prepare_ensemble_params(weights, biases, fold_mean=False)
    out_all = jax.block_until_ready(ensemble_forward(x, w_all, b_mean2))

    assert out_fold.shape == (B, K), out_fold.shape
    assert out_all.shape == (B, K), out_all.shape

    # Tight check against an apples-to-apples (bf16-quantized) JAX reference.
    assert jnp.allclose(out_fold, _quantized_ref(x, w_fold, b_mean),
                        atol=2e-3, rtol=2e-3), "folded path mismatch"
    assert jnp.allclose(out_all, _quantized_ref(x, w_all, b_mean2),
                        atol=2e-3, rtol=2e-3), "unfolded path mismatch"

    # Loose check against the full-precision module semantics (bf16 streaming
    # + reassociation of the mean, per review correctness note).
    assert jnp.allclose(out_fold, ref, atol=3e-2, rtol=3e-2), (
        float(jnp.max(jnp.abs(out_fold - ref))))
    assert jnp.allclose(out_all, ref, atol=3e-2, rtol=3e-2), (
        float(jnp.max(jnp.abs(out_all - ref))))

    # TODO(synk): mode='ind' (return stacked [M, B, K] per-model logits) needs
    # an output BlockSpec indexed by a model grid axis; only 'mean' is here.
    print("KERNEL_OK")
</pallas_src>

<mosaic_0001>
module attributes {stable_mosaic.version = 11 : i64} {
  func.func @_ensemble_kernel(%arg0: i32, %arg1: i32, %arg2: memref<2x1024xbf16, #tpu.memory_space<vmem>>, %arg3: memref<1x1024x128xbf16, #tpu.memory_space<vmem>>, %arg4: memref<1x128xf32, #tpu.memory_space<vmem>>, %arg5: memref<2x128xf32, #tpu.memory_space<vmem>>) attributes {dimension_semantics = [#tpu.dimension_semantics<parallel>, #tpu.dimension_semantics<arbitrary>], iteration_bounds = array<i64: 1, 1>, scalar_prefetch = 0 : i64, scratch_operands = 0 : i64, tpu.core_type = #tpu.core_type<tc>, window_params = [{transform_indices = @transform_0, window_bounds = array<i64: 2, 1024>}, {transform_indices = @transform_1, window_bounds = array<i64: 1, 1024, 128>}, {transform_indices = @transform_2, window_bounds = array<i64: 1, 128>}, {transform_indices = @transform_3, window_bounds = array<i64: 2, 128>}]} {
    %c0_i32 = arith.constant 0 : i32
    %0 = arith.cmpi eq, %arg1, %c0_i32 : i32
    %1 = arith.extui %0 : i1 to i32
    %c0_i32_0 = arith.constant 0 : i32
    %2 = arith.cmpi ne, %1, %c0_i32_0 : i32
    scf.if %2 {
      %cst_12 = arith.constant 0.000000e+00 : f32
      %15 = vector.broadcast %cst_12 : f32 to vector<2x128xf32>
      %c0_13 = arith.constant 0 : index
      %c0_14 = arith.constant 0 : index
      %16 = vector.load %arg5[%c0_13, %c0_14] : memref<2x128xf32, #tpu.memory_space<vmem>>, vector<2x128xf32>
      tpu.vector_store %arg5[%c0_13, %c0_14], %15 {strides = array<i32>} : memref<2x128xf32, #tpu.memory_space<vmem>>, vector<2x128xf32>,
    } else {
    }
    %cst = arith.constant 0.000000e+00 : f32
    %3 = vector.broadcast %cst : f32 to vector<2x128xf32>
    %c0 = arith.constant 0 : index
    %c0_1 = arith.constant 0 : index
    %4 = vector.load %arg2[%c0, %c0_1] : memref<2x1024xbf16, #tpu.memory_space<vmem>>, vector<2x1024xbf16>
    %c0_2 = arith.constant 0 : index
    %c0_3 = arith.constant 0 : index
    %c0_4 = arith.constant 0 : index
    %5 = vector.load %arg3[%c0_2, %c0_3, %c0_4] : memref<1x1024x128xbf16, #tpu.memory_space<vmem>>, vector<1x1024x128xbf16>
    %6 = vector.shape_cast %5 : vector<1x1024x128xbf16> to vector<1024x128xbf16>
    %cst_5 = arith.constant dense<0.000000e+00> : vector<2x128xf32>
    %7 = tpu.matmul %4, %6, %cst_5 {dimension_numbers = #tpu.dot_dimension_numbers<[1], [0], [0], [1], [0, 0, 1, 1], [], []>} : vector<2x1024xbf16>, vector<1024x128xbf16>, vector<2x128xf32> -> vector<2x128xf32>
    %8 = arith.addf %3, %7 : vector<2x128xf32>
    %c0_6 = arith.constant 0 : index
    %c0_7 = arith.constant 0 : index
    %9 = vector.load %arg5[%c0_6, %c0_7] : memref<2x128xf32, #tpu.memory_space<vmem>>, vector<2x128xf32>
    %10 = arith.addf %9, %8 : vector<2x128xf32>
    %c0_8 = arith.constant 0 : index
    %c0_9 = arith.constant 0 : index
    %11 = vector.load %arg5[%c0_8, %c0_9] : memref<2x128xf32, #tpu.memory_space<vmem>>, vector<2x128xf32>
    tpu.vector_store %arg5[%c0_8, %c0_9], %10 {strides = array<i32>} : memref<2x128xf32, #tpu.memory_space<vmem>>, vector<2x128xf32>,
    %c0_i32_10 = arith.constant 0 : i32
    %12 = arith.cmpi eq, %arg1, %c0_i32_10 : i32
    %13 = arith.extui %12 : i1 to i32
    %c0_i32_11 = arith.constant 0 : i32
    %14 = arith.cmpi ne, %13, %c0_i32_11 : i32
    scf.if %14 {
      %c0_12 = arith.constant 0 : index
      %c0_13 = arith.constant 0 : index
      %15 = vector.load %arg5[%c0_12, %c0_13] : memref<2x128xf32, #tpu.memory_space<vmem>>, vector<2x128xf32>
      %cst_14 = arith.constant 1.000000e+00 : f32
      %16 = vector.broadcast %cst_14 : f32 to vector<2x128xf32>
      %17 = arith.mulf %15, %16 : vector<2x128xf32>
      %c0_15 = arith.constant 0 : index
      %c0_16 = arith.constant 0 : index
      %18 = vector.load %arg4[%c0_15, %c0_16] : memref<1x128xf32, #tpu.memory_space<vmem>>, vector<1x128xf32>
      %19 = vector.broadcast %18 : vector<1x128xf32> to vector<2x128xf32>
      %20 = arith.addf %17, %19 : vector<2x128xf32>
      %c0_17 = arith.constant 0 : index
      %c0_18 = arith.constant 0 : index
      %21 = vector.load %arg5[%c0_17, %c0_18] : memref<2x128xf32, #tpu.memory_space<vmem>>, vector<2x128xf32>
      tpu.vector_store %arg5[%c0_17, %c0_18], %20 {strides = array<i32>} : memref<2x128xf32, #tpu.memory_space<vmem>>, vector<2x128xf32>,
    } else {
    }
    return
  }
  func.func @transform_0(%arg0: i32, %arg1: i32) -> (i32, i32) {
    %c0_i32 = arith.constant 0 : i32
    %c0_i32_0 = arith.constant 0 : i32
    return %c0_i32, %arg1 : i32, i32
  }
  func.func @transform_1(%arg0: i32, %arg1: i32) -> (i32, i32, i32) {
    %c0_i32 = arith.constant 0 : i32
    %c0_i32_0 = arith.constant 0 : i32
    return %c0_i32, %arg1, %arg0 : i32, i32, i32
  }
  func.func @transform_2(%arg0: i32, %arg1: i32) -> (i32, i32) {
    %c0_i32 = arith.constant 0 : i32
    %c0_i32_0 = arith.constant 0 : i32
    return %c0_i32, %arg0 : i32, i32
  }
  func.func @transform_3(%arg0: i32, %arg1: i32) -> (i32, i32) {
    %c0_i32 = arith.constant 0 : i32
    %c0_i32_0 = arith.constant 0 : i32
    return %c0_i32, %arg0 : i32, i32
  }
}

</mosaic_0001>

<llo_original>
// kernel: ensemble_forward.1
$region0: #{ensemble_forward.1}
  #allocation0 [shape = 'u32[]', space=smem, size = 0x4, offset = 0x4, fixed_abs, tag = 'smem constant byte address 0x4 - core index']
  #allocation1 [shape = 'u32[144,128]{1,0:T(1,128)}', space=vmem, size = 0x12000, scoped, tag = 'internal scratch']
  %s0 = inlined_call_operand.vmem [shape: bf16[2,1024], index: 0, kind: input, shape index: {}]
  %s1 = inlined_call_operand.hbm [shape: bf16[1,1024,128], index: 1, kind: input, shape index: {}]
  %s2 = inlined_call_operand.vmem [shape: f32[1,128], index: 2, kind: input, shape index: {}]
  %s3 = inlined_call_operand.hbm [shape: f32[2,128], index: 3, kind: output, shape index: {}]
  %s4 = sld [smem:[#allocation0]]
  $region34: #{ensemble_forward.1} parent=0
    _
  %s6 = ssub.s32 1, %s4
  %s7 = scalar_select 0, %s6, %s4
  $region1: #{ensemble_forward.1} parent=0
    #allocation2 [shape = 'u8[262144]{0}', space=vmem, size = 0x40000, scoped, tag = 'input window, operand 1, single buffered']
    #allocation3 [shape = 's32[1]{0}', space=sflag, size = 0x4, scoped, tag = 'scoped memory for ensemble_forward.1']
    #allocation4 [shape = 's32[1]{0}', space=sflag, size = 0x4, scoped, tag = 'scoped memory for ensemble_forward.1']
    #allocation5 [shape = 'u8[1024]{0}', space=vmem, size = 0x400, scoped, tag = 'output window, operand 0, single buffered']
    %8 = vsyncpa [#allocation3], 0
    %9 = vsyncpa [#allocation4], 0
    // Predicated region
    $region2: #{ensemble_forward.1} parent=1 // pred_check
      _
    $region3: #{ensemble_forward.1} parent=1 // pred_check_branch
      %11 = sbr.rel (0) target = $region5
    $region4: #{ensemble_forward.1} parent=1 // pred_region
      _
    $region5: #{ensemble_forward.1} parent=1 // pred_fallthru
      _
    // Predicated region
    $region6: #{ensemble_forward.1} parent=1 // pred_check
      _
    $region7: #{ensemble_forward.1} parent=1 // pred_check_branch
      %13 = sbr.rel (0) target = $region9
    $region8: #{ensemble_forward.1} parent=1 // pred_region
      %s15 = ssub.s32 8192, 8192
      %16 = vsyncadd [#allocation3], %s15
      %s17 = sshll.u32 [#allocation2], 4
      %s18 = int_to_ptr.vmem [resolvable:$true] %s17
      %23 = dma.hbm_to_vmem [thread:$0]  %s1, 8192, %s18, [#allocation3], 64, 64, 4
    $region9: #{ensemble_forward.1} parent=1 // pred_fallthru
      _
    // Predicated region
    $region10: #{ensemble_forward.1} parent=1 // pred_check
      _
    $region11: #{ensemble_forward.1} parent=1 // pred_check_branch
      %25 = sbr.rel (0) target = $region13
    $region12: #{ensemble_forward.1} parent=1 // pred_region
      _
    $region13: #{ensemble_forward.1} parent=1 // pred_fallthru
      _
    // Predicated region
    $region14: #{ensemble_forward.1} parent=1 // pred_check
      _
    $region15: #{ensemble_forward.1} parent=1 // pred_check_branch
      %27 = sbr.rel (0) target = $region17
    $region16: #{ensemble_forward.1} parent=1 // pred_region
      %28 = dma.done [#allocation3], 8192
    $region17: #{ensemble_forward.1} parent=1 // pred_fallthru
      _
    %p30 = scmp.eq.s32.totalorder 0, 0
    // Predicated region
    $region18: #{ensemble_forward.1} parent=1 // pred_check
      %p31 = pneg %p30
    $region19: #{ensemble_forward.1} parent=1 // pred_check_branch
      %33 = sbr.rel (%p31) target = $region21
    $region20: #{ensemble_forward.1} parent=1 // pred_region
      %34 = vst [vmem:[#allocation5] sm:$0x3] 0.0
    $region21: #{ensemble_forward.1} parent=1 // pred_fallthru
      _
    %v35 = vld [vmem:[%s0] sm:$0xff]
    %v36 = vld [vmem:[#allocation2] sm:$0xf]
    %v37 = vld [vmem:[#allocation2 + $0x4] sm:$0xf]
    %v38 = vld [vmem:[#allocation2 + $0x8] sm:$0xf]
    %v39 = vld [vmem:[#allocation2 + $0xc] sm:$0xf]
    %v40 = vld [vmem:[#allocation2 + $0x10] sm:$0xf]
    %v41 = vld [vmem:[#allocation2 + $0x14] sm:$0xf]
    %v42 = vld [vmem:[#allocation2 + $0x18] sm:$0xf]
    %v43 = vld [vmem:[#allocation2 + $0x1c] sm:$0xf]
    %v44 = vld [vmem:[#allocation2 + $0x20] sm:$0xf]
    %v45 = vld [vmem:[#allocation2 + $0x24] sm:$0xf]
    %v46 = vld [vmem:[#allocation2 + $0x28] sm:$0xf]
    %v47 = vld [vmem:[#allocation2 + $0x2c] sm:$0xf]
    %v48 = vld [vmem:[#allocation2 + $0x30] sm:$0xf]
    %v49 = vld [vmem:[#allocation2 + $0x34] sm:$0xf]
    %v50 = vld [vmem:[#allocation2 + $0x38] sm:$0xf]
    %v51 = vld [vmem:[#allocation2 + $0x3c] sm:$0xf]
    %v52 = vld [vmem:[#allocation2 + $0x40] sm:$0xf]
    %v53 = vld [vmem:[#allocation2 + $0x44] sm:$0xf]
    %v54 = vld [vmem:[#allocation2 + $0x48] sm:$0xf]
    %v55 = vld [vmem:[#allocation2 + $0x4c] sm:$0xf]
    %v56 = vld [vmem:[#allocation2 + $0x50] sm:$0xf]
    %v57 = vld [vmem:[#allocation2 + $0x54] sm:$0xf]
    %v58 = vld [vmem:[#allocation2 + $0x58] sm:$0xf]
    %v59 = vld [vmem:[#allocation2 + $0x5c] sm:$0xf]
    %v60 = vld [vmem:[#allocation2 + $0x60] sm:$0xf]
    %v61 = vld [vmem:[#allocation2 + $0x64] sm:$0xf]
    %v62 = vld [vmem:[#allocation2 + $0x68] sm:$0xf]
    %v63 = vld [vmem:[#allocation2 + $0x6c] sm:$0xf]
    %v64 = vld [vmem:[#allocation2 + $0x70] sm:$0xf]
    %v65 = vld [vmem:[#allocation2 + $0x74] sm:$0xf]
    %v66 = vld [vmem:[#allocation2 + $0x78] sm:$0xf]
    %v67 = vld [vmem:[#allocation2 + $0x7c] sm:$0xf]
    %v68 = vld [vmem:[#allocation2 + $0x80] sm:$0xf]
    %v69 = vld [vmem:[#allocation2 + $0x84] sm:$0xf]
    %v70 = vld [vmem:[#allocation2 + $0x88] sm:$0xf]
    %v71 = vld [vmem:[#allocation2 + $0x8c] sm:$0xf]
    %v72 = vld [vmem:[#allocation2 + $0x90] sm:$0xf]
    %v73 = vld [vmem:[#allocation2 + $0x94] sm:$0xf]
    %v74 = vld [vmem:[#allocation2 + $0x98] sm:$0xf]
    %v75 = vld [vmem:[#allocation2 + $0x9c] sm:$0xf]
    %v76 = vld [vmem:[#allocation2 + $0xa0] sm:$0xf]
    %v77 = vld [vmem:[#allocation2 + $0xa4] sm:$0xf]
    %v78 = vld [vmem:[#allocation2 + $0xa8] sm:$0xf]
    %v79 = vld [vmem:[#allocation2 + $0xac] sm:$0xf]
    %v80 = vld [vmem:[#allocation2 + $0xb0] sm:$0xf]
    %v81 = vld [vmem:[#allocation2 + $0xb4] sm:$0xf]
    %v82 = vld [vmem:[#allocation2 + $0xb8] sm:$0xf]
    %v83 = vld [vmem:[#allocation2 + $0xbc] sm:$0xf]
    %v84 = vld [vmem:[#allocation2 + $0xc0] sm:$0xf]
    %v85 = vld [vmem:[#allocation2 + $0xc4] sm:$0xf]
    %v86 = vld [vmem:[#allocation2 + $0xc8] sm:$0xf]
    %v87 = vld [vmem:[#allocation2 + $0xcc] sm:$0xf]
    %v88 = vld [vmem:[#allocation2 + $0xd0] sm:$0xf]
    %v89 = vld [vmem:[#allocation2 + $0xd4] sm:$0xf]
    %v90 = vld [vmem:[#allocation2 + $0xd8] sm:$0xf]
    %v91 = vld [vmem:[#allocation2 + $0xdc] sm:$0xf]
    %v92 = vld [vmem:[#allocation2 + $0xe0] sm:$0xf]
    %v93 = vld [vmem:[#allocation2 + $0xe4] sm:$0xf]
    %v94 = vld [vmem:[#allocation2 + $0xe8] sm:$0xf]
    %v95 = vld [vmem:[#allocation2 + $0xec] sm:$0xf]
    %v96 = vld [vmem:[#allocation2 + $0xf0] sm:$0xf]
    %v97 = vld [vmem:[#allocation2 + $0xf4] sm:$0xf]
    %v98 = vld [vmem:[#allocation2 + $0xf8] sm:$0xf]
    %v99 = vld [vmem:[#allocation2 + $0xfc] sm:$0xf]
    %v100 = vld [vmem:[#allocation2 + $0x100] sm:$0xf]
    %v101 = vld [vmem:[#allocation2 + $0x104] sm:$0xf]
    %v102 = vld [vmem:[#allocation2 + $0x108] sm:$0xf]
    %v103 = vld [vmem:[#allocation2 + $0x10c] sm:$0xf]
    %v104 = vld [vmem:[#allocation2 + $0x110] sm:$0xf]
    %v105 = vld [vmem:[#allocation2 + $0x114] sm:$0xf]
    %v106 = vld [vmem:[#allocation2 + $0x118] sm:$0xf]
    %v107 = vld [vmem:[#allocation2 + $0x11c] sm:$0xf]
    %v108 = vld [vmem:[#allocation2 + $0x120] sm:$0xf]
    %v109 = vld [vmem:[#allocation2 + $0x124] sm:$0xf]
    %v110 = vld [vmem:[#allocation2 + $0x128] sm:$0xf]
    %v111 = vld [vmem:[#allocation2 + $0x12c] sm:$0xf]
    %v112 = vld [vmem:[#allocation2 + $0x130] sm:$0xf]
    %v113 = vld [vmem:[#allocation2 + $0x134] sm:$0xf]
    %v114 = vld [vmem:[#allocation2 + $0x138] sm:$0xf]
    %v115 = vld [vmem:[#allocation2 + $0x13c] sm:$0xf]
    %v116 = vld [vmem:[#allocation2 + $0x140] sm:$0xf]
    %v117 = vld [vmem:[#allocation2 + $0x144] sm:$0xf]
    %v118 = vld [vmem:[#allocation2 + $0x148] sm:$0xf]
    %v119 = vld [vmem:[#allocation2 + $0x14c] sm:$0xf]
    %v120 = vld [vmem:[#allocation2 + $0x150] sm:$0xf]
    %v121 = vld [vmem:[#allocation2 + $0x154] sm:$0xf]
    %v122 = vld [vmem:[#allocation2 + $0x158] sm:$0xf]
    %v123 = vld [vmem:[#allocation2 + $0x15c] sm:$0xf]
    %v124 = vld [vmem:[#allocation2 + $0x160] sm:$0xf]
    %v125 = vld [vmem:[#allocation2 + $0x164] sm:$0xf]
    %v126 = vld [vmem:[#allocation2 + $0x168] sm:$0xf]
    %v127 = vld [vmem:[#allocation2 + $0x16c] sm:$0xf]
    %v128 = vld [vmem:[#allocation2 + $0x170] sm:$0xf]
    %v129 = vld [vmem:[#allocation2 + $0x174] sm:$0xf]
    %v130 = vld [vmem:[#allocation2 + $0x178] sm:$0xf]
    %v131 = vld [vmem:[#allocation2 + $0x17c] sm:$0xf]
    %v132 = vld [vmem:[#allocation2 + $0x180] sm:$0xf]
    %v133 = vld [vmem:[#allocation2 + $0x184] sm:$0xf]
    %v134 = vld [vmem:[#allocation2 + $0x188] sm:$0xf]
    %v135 = vld [vmem:[#allocation2 + $0x18c] sm:$0xf]
    %v136 = vld [vmem:[#allocation2 + $0x190] sm:$0xf]
    %v137 = vld [vmem:[#allocation2 + $0x194] sm:$0xf]
    %v138 = vld [vmem:[#allocation2 + $0x198] sm:$0xf]
    %v139 = vld [vmem:[#allocation2 + $0x19c] sm:$0xf]
    %v140 = vld [vmem:[#allocation2 + $0x1a0] sm:$0xf]
    %v141 = vld [vmem:[#allocation2 + $0x1a4] sm:$0xf]
    %v142 = vld [vmem:[#allocation2 + $0x1a8] sm:$0xf]
    %v143 = vld [vmem:[#allocation2 + $0x1ac] sm:$0xf]
    %v144 = vld [vmem:[#allocation2 + $0x1b0] sm:$0xf]
    %v145 = vld [vmem:[#allocation2 + $0x1b4] sm:$0xf]
    %v146 = vld [vmem:[#allocation2 + $0x1b8] sm:$0xf]
    %v147 = vld [vmem:[#allocation2 + $0x1bc] sm:$0xf]
    %v148 = vld [vmem:[#allocation2 + $0x1c0] sm:$0xf]
    %v149 = vld [vmem:[#allocation2 + $0x1c4] sm:$0xf]
    %v150 = vld [vmem:[#allocation2 + $0x1c8] sm:$0xf]
    %v151 = vld [vmem:[#allocation2 + $0x1cc] sm:$0xf]
    %v152 = vld [vmem:[#allocation2 + $0x1d0] sm:$0xf]
    %v153 = vld [vmem:[#allocation2 + $0x1d4] sm:$0xf]
    %v154 = vld [vmem:[#allocation2 + $0x1d8] sm:$0xf]
    %v155 = vld [vmem:[#allocation2 + $0x1dc] sm:$0xf]
    %v156 = vld [vmem:[#allocation2 + $0x1e0] sm:$0xf]
    %v157 = vld [vmem:[#allocation2 + $0x1e4] sm:$0xf]
    %v158 = vld [vmem:[#allocation2 + $0x1e8] sm:$0xf]
    %v159 = vld [vmem:[#allocation2 + $0x1ec] sm:$0xf]
    %v160 = vld [vmem:[#allocation2 + $0x1f0] sm:$0xf]
    %v161 = vld [vmem:[#allocation2 + $0x1f4] sm:$0xf]
    %v162 = vld [vmem:[#allocation2 + $0x1f8] sm:$0xf]
    %v163 = vld [vmem:[#allocation2 + $0x1fc] sm:$0xf]
    %v165 = vcombine.high %v35, %v35
    %v167 = vunpack.c.l.s4 1966171168
    %v168 = vunpack.c.0.s8 %v167
    %v169 = vlaneseq
    %v170 = vshrl.u32 %v169, 7
    %v171 = vsub.s32 %v168, %v170
    %v172 = vrot.slane %v35, %v171
    %v174 = vunpack.c.l.s4 1966171168
    %v175 = vunpack.c.0.s8 %v174
    %v176 = vlaneseq
    %v177 = vshrl.u32 %v176, 7
    %v178 = vsub.s32 %v175, %v177
    %v179 = vrot.slane %v165, %v178
    %v180 = vcombine.high %v172, %v172
    %v181 = vcombine.high %v179, %v179
    %v183 = vunpack.c.l.s4 1966171168
    %v184 = vunpack.c.0.s8 %v183
    %v185 = vlaneseq
    %v186 = vshrl.u32 %v185, 7
    %v187 = vsub.s32 %v184, %v186
    %v188 = vrot.slane %v172, %v187
    %v190 = vunpack.c.l.s4 1966171168
    %v191 = vunpack.c.0.s8 %v190
    %v192 = vlaneseq
    %v193 = vshrl.u32 %v192, 7
    %v194 = vsub.s32 %v191, %v193
    %v195 = vrot.slane %v179, %v194
    %v197 = vunpack.c.l.s4 1966171168
    %v198 = vunpack.c.0.s8 %v197
    %v199 = vlaneseq
    %v200 = vshrl.u32 %v199, 7
    %v201 = vsub.s32 %v198, %v200
    %v202 = vrot.slane %v180, %v201
    %v204 = vunpack.c.l.s4 1966171168
    %v205 = vunpack.c.0.s8 %v204
    %v206 = vlaneseq
    %v207 = vshrl.u32 %v206, 7
    %v208 = vsub.s32 %v205, %v207
    %v209 = vrot.slane %v181, %v208
    %v210 = vcombine.high %v188, %v188
    %v211 = vcombine.high %v195, %v195
    %v212 = vcombine.high %v202, %v202
    %v213 = vcombine.high %v209, %v209
    %v350 = vunpack.c.l.b16 %v36
    %v351 = vunpack.c.l.b16 %v37
    %v352 = vunpack.c.l.b16 %v38
    %v353 = vunpack.c.l.b16 %v39
    %v354 = vunpack.c.l.b16 %v40
    %v355 = vunpack.c.l.b16 %v41
    %v356 = vunpack.c.l.b16 %v42
    %v357 = vunpack.c.l.b16 %v43
    %v358 = vunpack.c.l.b16 %v44
    %v359 = vunpack.c.l.b16 %v45
    %v360 = vunpack.c.l.b16 %v46
    %v361 = vunpack.c.l.b16 %v47
    %v362 = vunpack.c.l.b16 %v48
    %v363 = vunpack.c.l.b16 %v49
    %v364 = vunpack.c.l.b16 %v50
    %v365 = vunpack.c.l.b16 %v51
    %v366 = vunpack.c.l.b16 %v52
    %v367 = vunpack.c.l.b16 %v53
    %v368 = vunpack.c.l.b16 %v54
    %v369 = vunpack.c.l.b16 %v55
    %v370 = vunpack.c.l.b16 %v56
    %v371 = vunpack.c.l.b16 %v57
    %v372 = vunpack.c.l.b16 %v58
    %v373 = vunpack.c.l.b16 %v59
    %v374 = vunpack.c.l.b16 %v60
    %v375 = vunpack.c.l.b16 %v61
    %v376 = vunpack.c.l.b16 %v62
    %v377 = vunpack.c.l.b16 %v63
    %v378 = vunpack.c.l.b16 %v64
    %v379 = vunpack.c.l.b16 %v65
    %v380 = vunpack.c.l.b16 %v66
    %v381 = vunpack.c.l.b16 %v67
    %v382 = vunpack.c.l.b16 %v68
    %v383 = vunpack.c.l.b16 %v69
    %v384 = vunpack.c.l.b16 %v70
    %v385 = vunpack.c.l.b16 %v71
    %v386 = vunpack.c.l.b16 %v72
    %v387 = vunpack.c.l.b16 %v73
    %v388 = vunpack.c.l.b16 %v74
    %v389 = vunpack.c.l.b16 %v75
    %v390 = vunpack.c.l.b16 %v76
    %v391 = vunpack.c.l.b16 %v77
    %v392 = vunpack.c.l.b16 %v78
    %v393 = vunpack.c.l.b16 %v79
    %v394 = vunpack.c.l.b16 %v80
    %v395 = vunpack.c.l.b16 %v81
    %v396 = vunpack.c.l.b16 %v82
    %v397 = vunpack.c.l.b16 %v83
    %v398 = vunpack.c.l.b16 %v84
    %v399 = vunpack.c.l.b16 %v85
    %v400 = vunpack.c.l.b16 %v86
    %v401 = vunpack.c.l.b16 %v87
    %v402 = vunpack.c.l.b16 %v88
    %v403 = vunpack.c.l.b16 %v89
    %v404 = vunpack.c.l.b16 %v90
    %v405 = vunpack.c.l.b16 %v91
    %v406 = vunpack.c.l.b16 %v92
    %v407 = vunpack.c.l.b16 %v93
    %v408 = vunpack.c.l.b16 %v94
    %v409 = vunpack.c.l.b16 %v95
    %v410 = vunpack.c.l.b16 %v96
    %v411 = vunpack.c.l.b16 %v97
    %v412 = vunpack.c.l.b16 %v98
    %v413 = vunpack.c.l.b16 %v99
    %v414 = vunpack.c.l.b16 %v100
    %v415 = vunpack.c.l.b16 %v101
    %v416 = vunpack.c.l.b16 %v102
    %v417 = vunpack.c.l.b16 %v103
    %v418 = vunpack.c.l.b16 %v104
    %v419 = vunpack.c.l.b16 %v105
    %v420 = vunpack.c.l.b16 %v106
    %v421 = vunpack.c.l.b16 %v107
    %v422 = vunpack.c.l.b16 %v108
    %v423 = vunpack.c.l.b16 %v109
    %v424 = vunpack.c.l.b16 %v110
    %v425 = vunpack.c.l.b16 %v111
    %v426 = vunpack.c.l.b16 %v112
    %v427 = vunpack.c.l.b16 %v113
    %v428 = vunpack.c.l.b16 %v114
    %v429 = vunpack.c.l.b16 %v115
    %v430 = vunpack.c.l.b16 %v116
    %v431 = vunpack.c.l.b16 %v117
    %v432 = vunpack.c.l.b16 %v118
    %v433 = vunpack.c.l.b16 %v119
    %v434 = vunpack.c.l.b16 %v120
    %v435 = vunpack.c.l.b16 %v121
    %v436 = vunpack.c.l.b16 %v122
    %v437 = vunpack.c.l.b16 %v123
    %v438 = vunpack.c.l.b16 %v124
    %v439 = vunpack.c.l.b16 %v125
    %v440 = vunpack.c.l.b16 %v126
    %v441 = vunpack.c.l.b16 %v127
    %v442 = vunpack.c.l.b16 %v128
    %v443 = vunpack.c.l.b16 %v129
    %v444 = vunpack.c.l.b16 %v130
    %v445 = vunpack.c.l.b16 %v131
    %v446 = vunpack.c.l.b16 %v132
    %v447 = vunpack.c.l.b16 %v133
    %v448 = vunpack.c.l.b16 %v134
    %v449 = vunpack.c.l.b16 %v135
    %v450 = vunpack.c.l.b16 %v136
    %v451 = vunpack.c.l.b16 %v137
    %v452 = vunpack.c.l.b16 %v138
    %v453 = vunpack.c.l.b16 %v139
    %v454 = vunpack.c.l.b16 %v140
    %v455 = vunpack.c.l.b16 %v141
    %v456 = vunpack.c.l.b16 %v142
    %v457 = vunpack.c.l.b16 %v143
    %v458 = vunpack.c.l.b16 %v144
    %v459 = vunpack.c.l.b16 %v145
    %v460 = vunpack.c.l.b16 %v146
    %v461 = vunpack.c.l.b16 %v147
    %v462 = vunpack.c.l.b16 %v148
    %v463 = vunpack.c.l.b16 %v149
    %v464 = vunpack.c.l.b16 %v150
    %v465 = vunpack.c.l.b16 %v151
    %v466 = vunpack.c.l.b16 %v152
    %v467 = vunpack.c.l.b16 %v153
    %v468 = vunpack.c.l.b16 %v154
    %v469 = vunpack.c.l.b16 %v155
    %v470 = vunpack.c.l.b16 %v156
    %v471 = vunpack.c.l.b16 %v157
    %v472 = vunpack.c.l.b16 %v158
    %v473 = vunpack.c.l.b16 %v159
    %v474 = vunpack.c.l.b16 %v160
    %v475 = vunpack.c.l.b16 %v161
    %v476 = vunpack.c.l.b16 %v162
    %v477 = vunpack.c.l.b16 %v163
    %v478 = vpack.c.b16 %v351, %v350
    %v479 = vpack.c.b16 %v353, %v352
    %v480 = vpack.c.b16 %v355, %v354
    %v481 = vpack.c.b16 %v357, %v356
    %v482 = vpack.c.b16 %v359, %v358
    %v483 = vpack.c.b16 %v361, %v360
    %v484 = vpack.c.b16 %v363, %v362
    %v485 = vpack.c.b16 %v365, %v364
    %v486 = vpack.c.b16 %v367, %v366
    %v487 = vpack.c.b16 %v369, %v368
    %v488 = vpack.c.b16 %v371, %v370
    %v489 = vpack.c.b16 %v373, %v372
    %v490 = vpack.c.b16 %v375, %v374
    %v491 = vpack.c.b16 %v377, %v376
    %v492 = vpack.c.b16 %v379, %v378
    %v493 = vpack.c.b16 %v381, %v380
    %v494 = vpack.c.b16 %v383, %v382
    %v495 = vpack.c.b16 %v385, %v384
    %v496 = vpack.c.b16 %v387, %v386
    %v497 = vpack.c.b16 %v389, %v388
    %v498 = vpack.c.b16 %v391, %v390
    %v499 = vpack.c.b16 %v393, %v392
    %v500 = vpack.c.b16 %v395, %v394
    %v501 = vpack.c.b16 %v397, %v396
    %v502 = vpack.c.b16 %v399, %v398
    %v503 = vpack.c.b16 %v401, %v400
    %v504 = vpack.c.b16 %v403, %v402
    %v505 = vpack.c.b16 %v405, %v404
    %v506 = vpack.c.b16 %v407, %v406
    %v507 = vpack.c.b16 %v409, %v408
    %v508 = vpack.c.b16 %v411, %v410
    %v509 = vpack.c.b16 %v413, %v412
    %v510 = vpack.c.b16 %v415, %v414
    %v511 = vpack.c.b16 %v417, %v416
    %v512 = vpack.c.b16 %v419, %v418
    %v513 = vpack.c.b16 %v421, %v420
    %v514 = vpack.c.b16 %v423, %v422
    %v515 = vpack.c.b16 %v425, %v424
    %v516 = vpack.c.b16 %v427, %v426
    %v517 = vpack.c.b16 %v429, %v428
    %v518 = vpack.c.b16 %v431, %v430
    %v519 = vpack.c.b16 %v433, %v432
    %v520 = vpack.c.b16 %v435, %v434
    %v521 = vpack.c.b16 %v437, %v436
    %v522 = vpack.c.b16 %v439, %v438
    %v523 = vpack.c.b16 %v441, %v440
    %v524 = vpack.c.b16 %v443, %v442
    %v525 = vpack.c.b16 %v445, %v444
    %v526 = vpack.c.b16 %v447, %v446
    %v527 = vpack.c.b16 %v449, %v448
    %v528 = vpack.c.b16 %v451, %v450
    %v529 = vpack.c.b16 %v453, %v452
    %v530 = vpack.c.b16 %v455, %v454
    %v531 = vpack.c.b16 %v457, %v456
    %v532 = vpack.c.b16 %v459, %v458
    %v533 = vpack.c.b16 %v461, %v460
    %v534 = vpack.c.b16 %v463, %v462
    %v535 = vpack.c.b16 %v465, %v464
    %v536 = vpack.c.b16 %v467, %v466
    %v537 = vpack.c.b16 %v469, %v468
    %v538 = vpack.c.b16 %v471, %v470
    %v539 = vpack.c.b16 %v473, %v472
    %v540 = vpack.c.b16 %v475, %v474
    %v541 = vpack.c.b16 %v477, %v476
    %606 = vmatprep.subr.bf16.mxu0 0
    %607 = vmatpush1.bf16.msra.mxu0 %v478
    %608 = vmatprep.subr.bf16.mxu0 0
    %609 = vmatpush1.bf16.msra.mxu0 %v479
    %610 = vmatprep.subr.bf16.mxu0 0
    %611 = vmatpush1.bf16.msra.mxu0 %v480
    %612 = vmatprep.subr.bf16.mxu0 0
    %613 = vmatpush1.bf16.msra.mxu0 %v481
    %614 = vmatprep.subr.bf16.mxu0 0
    %615 = vmatpush1.bf16.msra.mxu0 %v482
    %616 = vmatprep.subr.bf16.mxu0 0
    %617 = vmatpush1.bf16.msra.mxu0 %v483
    %618 = vmatprep.subr.bf16.mxu0 0
    %619 = vmatpush1.bf16.msra.mxu0 %v484
    %620 = vmatprep.subr.bf16.mxu0 0
    %621 = vmatpush1.bf16.msra.mxu0 %v485
    %622 = vmatprep.subr.bf16.mxu0 0
    %623 = vmatpush1.bf16.msra.mxu0 %v486
    %624 = vmatprep.subr.bf16.mxu0 0
    %625 = vmatpush1.bf16.msra.mxu0 %v487
    %626 = vmatprep.subr.bf16.mxu0 0
    %627 = vmatpush1.bf16.msra.mxu0 %v488
    %628 = vmatprep.subr.bf16.mxu0 0
    %629 = vmatpush1.bf16.msra.mxu0 %v489
    %630 = vmatprep.subr.bf16.mxu0 0
    %631 = vmatpush1.bf16.msra.mxu0 %v490
    %632 = vmatprep.subr.bf16.mxu0 0
    %633 = vmatpush1.bf16.msra.mxu0 %v491
    %634 = vmatprep.subr.bf16.mxu0 0
    %635 = vmatpush1.bf16.msra.mxu0 %v492
    %636 = vmatprep.subr.bf16.mxu0 0
    %637 = vmatpush1.bf16.msra.mxu0 %v493
    %638 = vmatprep.mubr.bf16.mxu0 %v202
    %639 = vmatmul.mubr.bf16.gmra.mrb[0].mxu0 %v188
    %v640 = vpop.f32.mrb[0].mxu0
    %v641 = vadd.f32 0.0, %v640
    %v642 = vpop.f32.mrb[0].mxu0
    %v643 = vpop.f32.mrb[0].mxu0
    %v644 = vpop.f32.mrb[0].mxu0
    %645 = vdwg.mxu0
    %646 = vmatprep.subr.bf16.mxu0 0
    %647 = vmatpush1.bf16.msra.mxu0 %v494
    %648 = vmatprep.subr.bf16.mxu0 0
    %649 = vmatpush1.bf16.msra.mxu0 %v495
    %650 = vmatprep.subr.bf16.mxu0 0
    %651 = vmatpush1.bf16.msra.mxu0 %v496
    %652 = vmatprep.subr.bf16.mxu0 0
    %653 = vmatpush1.bf16.msra.mxu0 %v497
    %654 = vmatprep.subr.bf16.mxu0 0
    %655 = vmatpush1.bf16.msra.mxu0 %v498
    %656 = vmatprep.subr.bf16.mxu0 0
    %657 = vmatpush1.bf16.msra.mxu0 %v499
    %658 = vmatprep.subr.bf16.mxu0 0
    %659 = vmatpush1.bf16.msra.mxu0 %v500
    %660 = vmatprep.subr.bf16.mxu0 0
    %661 = vmatpush1.bf16.msra.mxu0 %v501
    %662 = vmatprep.subr.bf16.mxu0 0
    %663 = vmatpush1.bf16.msra.mxu0 %v502
    %664 = vmatprep.subr.bf16.mxu0 0
    %665 = vmatpush1.bf16.msra.mxu0 %v503
    %666 = vmatprep.subr.bf16.mxu0 0
    %667 = vmatpush1.bf16.msra.mxu0 %v504
    %668 = vmatprep.subr.bf16.mxu0 0
    %669 = vmatpush1.bf16.msra.mxu0 %v505
    %670 = vmatprep.subr.bf16.mxu0 0
    %671 = vmatpush1.bf16.msra.mxu0 %v506
    %672 = vmatprep.subr.bf16.mxu0 0
    %673 = vmatpush1.bf16.msra.mxu0 %v507
    %674 = vmatprep.subr.bf16.mxu0 0
    %675 = vmatpush1.bf16.msra.mxu0 %v508
    %676 = vmatprep.subr.bf16.mxu0 0
    %677 = vmatpush1.bf16.msra.mxu0 %v509
    %678 = vmatprep.mubr.bf16.mxu0 %v212
    %679 = vmatmul.mubr.bf16.gmra.mrb[0].mxu0 %v210
    %v680 = vpop.f32.mrb[0].mxu0
    %v681 = vadd.f32 %v641, %v680
    %v682 = vpop.f32.mrb[0].mxu0
    %v683 = vpop.f32.mrb[0].mxu0
    %v684 = vpop.f32.mrb[0].mxu0
    %685 = vdwg.mxu0
    %686 = vmatprep.subr.bf16.mxu0 0
    %687 = vmatpush1.bf16.msra.mxu0 %v510
    %688 = vmatprep.subr.bf16.mxu0 0
    %689 = vmatpush1.bf16.msra.mxu0 %v511
    %690 = vmatprep.subr.bf16.mxu0 0
    %691 = vmatpush1.bf16.msra.mxu0 %v512
    %692 = vmatprep.subr.bf16.mxu0 0
    %693 = vmatpush1.bf16.msra.mxu0 %v513
    %694 = vmatprep.subr.bf16.mxu0 0
    %695 = vmatpush1.bf16.msra.mxu0 %v514
    %696 = vmatprep.subr.bf16.mxu0 0
    %697 = vmatpush1.bf16.msra.mxu0 %v515
    %698 = vmatprep.subr.bf16.mxu0 0
    %699 = vmatpush1.bf16.msra.mxu0 %v516
    %700 = vmatprep.subr.bf16.mxu0 0
    %701 = vmatpush1.bf16.msra.mxu0 %v517
    %702 = vmatprep.subr.bf16.mxu0 0
    %703 = vmatpush1.bf16.msra.mxu0 %v518
    %704 = vmatprep.subr.bf16.mxu0 0
    %705 = vmatpush1.bf16.msra.mxu0 %v519
    %706 = vmatprep.subr.bf16.mxu0 0
    %707 = vmatpush1.bf16.msra.mxu0 %v520
    %708 = vmatprep.subr.bf16.mxu0 0
    %709 = vmatpush1.bf16.msra.mxu0 %v521
    %710 = vmatprep.subr.bf16.mxu0 0
    %711 = vmatpush1.bf16.msra.mxu0 %v522
    %712 = vmatprep.subr.bf16.mxu0 0
    %713 = vmatpush1.bf16.msra.mxu0 %v523
    %714 = vmatprep.subr.bf16.mxu0 0
    %715 = vmatpush1.bf16.msra.mxu0 %v524
    %716 = vmatprep.subr.bf16.mxu0 0
    %717 = vmatpush1.bf16.msra.mxu0 %v525
    %718 = vmatprep.mubr.bf16.mxu0 %v209
    %719 = vmatmul.mubr.bf16.gmra.mrb[0].mxu0 %v195
    %v720 = vpop.f32.mrb[0].mxu0
    %v721 = vadd.f32 %v681, %v720
    %v722 = vpop.f32.mrb[0].mxu0
    %v723 = vpop.f32.mrb[0].mxu0
    %v724 = vpop.f32.mrb[0].mxu0
    %725 = vdwg.mxu0
    %726 = vmatprep.subr.bf16.mxu0 0
    %727 = vmatpush1.bf16.msra.mxu0 %v526
    %728 = vmatprep.subr.bf16.mxu0 0
    %729 = vmatpush1.bf16.msra.mxu0 %v527
    %730 = vmatprep.subr.bf16.mxu0 0
    %731 = vmatpush1.bf16.msra.mxu0 %v528
    %732 = vmatprep.subr.bf16.mxu0 0
    %733 = vmatpush1.bf16.msra.mxu0 %v529
    %734 = vmatprep.subr.bf16.mxu0 0
    %735 = vmatpush1.bf16.msra.mxu0 %v530
    %736 = vmatprep.subr.bf16.mxu0 0
    %737 = vmatpush1.bf16.msra.mxu0 %v531
    %738 = vmatprep.subr.bf16.mxu0 0
    %739 = vmatpush1.bf16.msra.mxu0 %v532
    %740 = vmatprep.subr.bf16.mxu0 0
    %741 = vmatpush1.bf16.msra.mxu0 %v533
    %742 = vmatprep.subr.bf16.mxu0 0
    %743 = vmatpush1.bf16.msra.mxu0 %v534
    %744 = vmatprep.subr.bf16.mxu0 0
    %745 = vmatpush1.bf16.msra.mxu0 %v535
    %746 = vmatprep.subr.bf16.mxu0 0
    %747 = vmatpush1.bf16.msra.mxu0 %v536
    %748 = vmatprep.subr.bf16.mxu0 0
    %749 = vmatpush1.bf16.msra.mxu0 %v537
    %750 = vmatprep.subr.bf16.mxu0 0
    %751 = vmatpush1.bf16.msra.mxu0 %v538
    %752 = vmatprep.subr.bf16.mxu0 0
    %753 = vmatpush1.bf16.msra.mxu0 %v539
    %754 = vmatprep.subr.bf16.mxu0 0
    %755 = vmatpush1.bf16.msra.mxu0 %v540
    %756 = vmatprep.subr.bf16.mxu0 0
    %757 = vmatpush1.bf16.msra.mxu0 %v541
    %758 = vmatprep.mubr.bf16.mxu0 %v213
    %759 = vmatmul.mubr.bf16.gmra.mrb[0].mxu0 %v211
    %v760 = vpop.f32.mrb[0].mxu0
    %v761 = vadd.f32 %v721, %v760
    %v762 = vpop.f32.mrb[0].mxu0
    %v763 = vpop.f32.mrb[0].mxu0
    %v764 = vpop.f32.mrb[0].mxu0
    %765 = vdwg.mxu0
    %v766 = vld [vmem:[#allocation5] sm:$0x3]
    %v767 = vadd.f32 %v766, %v761
    %768 = vst [vmem:[#allocation5] sm:$0x3] %v767
    // Predicated region
    $region22: #{ensemble_forward.1} parent=1 // pred_check
      %p769 = pneg %p30
    $region23: #{ensemble_forward.1} parent=1 // pred_check_branch
      %771 = sbr.rel (%p769) target = $region25
    $region24: #{ensemble_forward.1} parent=1 // pred_region
      %v772 = vld [vmem:[#allocation5] sm:$0x3]
      %v773 = vld [vmem:[%s2] sm:$0x1]
      %v775 = vlaneseq
      %v776 = vshrl.u32 %v775, 7
      %v777 = vsub.s32 0, %v776
      %v778 = vrot.slane %v773, %v777
      %v780 = vadd.f32 %v772, %v778
      %781 = vst [vmem:[#allocation5] sm:$0x3] %v780
    $region25: #{ensemble_forward.1} parent=1 // pred_fallthru
      _
    // Predicated region
    $region26: #{ensemble_forward.1} parent=1 // pred_check
      _
    $region27: #{ensemble_forward.1} parent=1 // pred_check_branch
      %783 = sbr.rel (0) target = $region29
    $region28: #{ensemble_forward.1} parent=1 // pred_region
      %s785 = ssub.s32 32, 32
      %786 = vsyncadd [#allocation4], %s785
      %s788 = sshll.u32 [#allocation5], 4
      %s789 = int_to_ptr.vmem [resolvable:$true] %s788
      %791 = dma.vmem_to_hbm [thread:$0]  %s789, 32, %s3, [#allocation4]
    $region29: #{ensemble_forward.1} parent=1 // pred_fallthru
      _
    // Predicated region
    $region30: #{ensemble_forward.1} parent=1 // pred_check
      _
    $region31: #{ensemble_forward.1} parent=1 // pred_check_branch
      %793 = sbr.rel (0) target = $region33
    $region32: #{ensemble_forward.1} parent=1 // pred_region
      %794 = dma.done [#allocation4], 32
    $region33: #{ensemble_forward.1} parent=1 // pred_fallthru
      _
    %795 = vsyncpa [#allocation3], 1
    %796 = vsyncpa [#allocation4], 1

</llo_original>
